<compile_context>
chip_gen: v7x
topology: tpu7x:2x2x1
jax: 0.10.0
libtpu: 0.0.40
codegen_flags: <defaults>
</compile_context>

<pallas_src>
import jax
import jax.numpy as jnp
from jax.experimental import pallas as pl
from jax.experimental.pallas import tpu as pltpu


def _round_up(x, m):
    return ((x + m - 1) // m) * m


def _encdec_kernel(x_ref, we_ref, be_ref, wd_ref, bd_ref, out_ref, hid_ref):
    """Fused encoder+decoder hot path for one batch tile.

    x_ref:  (TB, Fp)      f32 flattened input image tile (cast to bf16 here)
    we_ref: (Fp, HIDp)    bf16 encoder weight (resident, constant index_map)
    be_ref: (1, HIDp)     f32 encoder bias (resident)
    wd_ref: (HIDp, Fp)    bf16 decoder weight (resident)
    bd_ref: (1, Fp)       f32 decoder bias (resident)
    out_ref: (TB, Fp)     reconstructed image tile (sigmoid)
    hid_ref: (TB, HIDp)   encoder hidden state tile (ReLU)
    """
    # In-kernel cast: one HBM pass over the input, bf16 only inside VMEM.
    x = x_ref[...].astype(jnp.bfloat16)

    # Encoder: Linear + ReLU (MXU bf16 matmul, f32 accumulate; f32 epilogue).
    h = jnp.dot(x, we_ref[...], preferred_element_type=jnp.float32)
    h = jnp.maximum(h + be_ref[...], 0.0)
    hid_ref[...] = h.astype(hid_ref.dtype)

    # Decoder: Linear + Sigmoid (hidden recast to bf16 for the MXU).
    o = jnp.dot(h.astype(jnp.bfloat16), wd_ref[...],
                preferred_element_type=jnp.float32)
    o = o + bd_ref[...]
    # sigmoid(x) == 0.5*tanh(0.5*x) + 0.5 : tanh runs on the EUP slot instead
    # of exp + full-precision divide on the VALU.
    out_ref[...] = (0.5 * jnp.tanh(0.5 * o) + 0.5).astype(out_ref.dtype)


def prepare_params(params):
    """One-time pad/cast of the Linear parameters (hoisted out of the hot path).

    Accepts biases as either (HID,)/(F,) (PyTorch Linear convention) or
    (1, HID)/(1, F).
    """
    we, be, wd, bd = params
    F, HID = we.shape
    F_pad = _round_up(F, 128)
    # Minimal lane padding only; do NOT pad HID further "for the MXU" -- the
    # kernel is HBM-bound, extra K padding is pure zero-FLOP traffic.
    HID_pad = _round_up(HID, 128)

    # Zero padding keeps the math exact in the valid region:
    #   padded We rows / x cols contribute 0 to h, padded be cols are 0 so
    #   padded hidden cols are ReLU(0) = 0, and padded Wd rows contribute 0.
    we_p = jnp.pad(we.astype(jnp.bfloat16), ((0, F_pad - F), (0, HID_pad - HID)))
    be_p = jnp.pad(jnp.asarray(be, jnp.float32).reshape(1, -1),
                   ((0, 0), (0, HID_pad - HID)))
    wd_p = jnp.pad(wd.astype(jnp.bfloat16), ((0, HID_pad - HID), (0, F_pad - F)))
    bd_p = jnp.pad(jnp.asarray(bd, jnp.float32).reshape(1, -1),
                   ((0, 0), (0, F_pad - F)))
    return {"we": we_p, "be": be_p, "wd": wd_p, "bd": bd_p,
            "F": F, "HID": HID, "F_pad": F_pad, "HID_pad": HID_pad}


def _pick_batch_tile(B):
    """Batch tile: multiple of 16 (bf16 sublanes), up to 512 rows, and capped
    at ceil(B/2) rounded to 16 so there are >= 2 grid steps whenever the batch
    allows (v7x has 2 TensorCores; a single step runs on one TC only)."""
    return min(512, _round_up(-(-B // 2), 16))


def encoder_decoder_forward(src, prepped, *,
                            out_dtype=jnp.float32, hid_dtype=jnp.float32):
    """Runs the fused encoder-decoder Pallas kernel.

    src:     (B, C, H, W) image batch (NCHW, like PyTorch).
    prepped: output of prepare_params(params).
    returns (outputs, hidden_enc) mirroring the PyTorch module.
    """
    B, C, H, W = src.shape
    F = C * H * W
    assert F == prepped["F"], "prepared params do not match input feature size"
    F_pad, HID, HID_pad = prepped["F_pad"], prepped["HID"], prepped["HID_pad"]

    TB = _pick_batch_tile(B)
    B_pad = _round_up(B, TB)

    # Metadata-only flatten; the bf16 cast happens inside the kernel.
    x = src.reshape(B, F)
    if B_pad != B or F_pad != F:
        # Only pad when required (MNIST F=784 or ragged batch); for 128-multiple
        # F and TB-multiple B this branch is skipped and no copy is made.
        x = jnp.pad(x, ((0, B_pad - B), (0, F_pad - F)))

    grid = (B_pad // TB,)

    # VMEM budget: resident weights (double-buffered by the pipeline) plus
    # double-buffered streaming x/out/hid tiles, with headroom for in-kernel
    # temporaries.  Clamp to [32 MiB default scope, 64 MiB v7x physical].
    x_bytes = int(jnp.dtype(x.dtype).itemsize)
    out_bytes = int(jnp.dtype(out_dtype).itemsize)
    hid_bytes = int(jnp.dtype(hid_dtype).itemsize)
    weight_bytes = 2 * (F_pad * HID_pad * 2) + (HID_pad + F_pad) * 4
    stream_bytes = TB * F_pad * x_bytes + TB * F_pad * out_bytes + TB * HID_pad * hid_bytes
    vmem_limit = int(min(max(2 * weight_bytes + 2 * stream_bytes + (4 << 20),
                             32 << 20), 64 << 20))

    out_flat, hidden = pl.pallas_call(
        _encdec_kernel,
        out_shape=(
            jax.ShapeDtypeStruct((B_pad, F_pad), out_dtype),
            jax.ShapeDtypeStruct((B_pad, HID_pad), hid_dtype),
        ),
        grid=grid,
        in_specs=[
            # Streaming batch tile (f32, cast in-kernel).
            pl.BlockSpec((TB, F_pad), lambda i: (i, 0)),
            # Weights/biases: constant block index -> stay resident in VMEM
            # across batch-grid steps (no re-DMA).
            pl.BlockSpec((F_pad, HID_pad), lambda i: (0, 0)),
            pl.BlockSpec((1, HID_pad), lambda i: (0, 0)),
            pl.BlockSpec((HID_pad, F_pad), lambda i: (0, 0)),
            pl.BlockSpec((1, F_pad), lambda i: (0, 0)),
        ],
        out_specs=(
            pl.BlockSpec((TB, F_pad), lambda i: (i, 0)),
            pl.BlockSpec((TB, HID_pad), lambda i: (i, 0)),
        ),
        compiler_params=pltpu.CompilerParams(
            # Batch-grid steps are independent -> shard across TCs on v7x.
            dimension_semantics=("parallel",),
            vmem_limit_bytes=vmem_limit,
        ),
    )(x, prepped["we"], prepped["be"], prepped["wd"], prepped["bd"])

    # NOTE: padded output columns hold sigmoid(0) = 0.5 and padded hidden
    # columns hold 0; they are removed by the slices below.  When no padding
    # was needed the slice/reshape is metadata-only.
    out = out_flat
    if B_pad != B or F_pad != F:
        out = out_flat[:B, :F]
    outputs = out.reshape(B, C, H, W)
    hid = hidden
    if B_pad != B or HID_pad != HID:
        hid = hidden[:B, :HID]
    return outputs, hid


def init_params(key, in_features, hidden_dim):
    """Deterministic synthetic parameters (no checkpoint load)."""
    k1, k2, k3, k4 = jax.random.split(key, 4)
    scale_e = 1.0 / jnp.sqrt(jnp.float32(in_features))
    scale_d = 1.0 / jnp.sqrt(jnp.float32(hidden_dim))
    we = jax.random.uniform(k1, (in_features, hidden_dim), jnp.float32,
                            -scale_e, scale_e)
    be = jax.random.uniform(k2, (hidden_dim,), jnp.float32, -scale_e, scale_e)
    wd = jax.random.uniform(k3, (hidden_dim, in_features), jnp.float32,
                            -scale_d, scale_d)
    bd = jax.random.uniform(k4, (in_features,), jnp.float32, -scale_d, scale_d)
    return we, be, wd, bd


if __name__ == "__main__":
    # TODO(synk): the data='text' branch (recurrent seq2seq decode with random
    # teacher forcing) is not implemented; only the data='image' path is.
    key = jax.random.PRNGKey(0)
    k_x, k_p = jax.random.split(key)

    # Small shapes consistent with the image branch: batch=2, channels=4, spatial=16.
    B, C, H, W = 2, 4, 16, 16
    HID = 32

    src = jax.random.normal(k_x, (B, C, H, W), dtype=jnp.float32)
    params = init_params(k_p, C * H * W, HID)
    prepped = prepare_params(params)        # pad/cast once, outside the hot path

    outputs, hidden_enc = encoder_decoder_forward(src, prepped)
    jax.block_until_ready((outputs, hidden_enc))

    # Sanity check against a plain-JAX f32 reference of the same forward.
    # (bf16 MXU operands with f32 accumulation -> loosened tolerances.)
    we, be, wd, bd = params
    x_flat = src.reshape(B, -1)
    h_ref = jnp.maximum(x_flat @ we + be[None, :], 0.0)
    o_ref = jax.nn.sigmoid(h_ref @ wd + bd[None, :]).reshape(B, C, H, W)
    assert hidden_enc.shape == (B, HID)
    assert outputs.shape == (B, C, H, W)
    assert jnp.allclose(hidden_enc, h_ref, atol=3e-2, rtol=3e-2)
    assert jnp.allclose(outputs, o_ref, atol=2e-2, rtol=2e-2)

    print("KERNEL_OK")
</pallas_src>

<mosaic_0001>
module attributes {stable_mosaic.version = 11 : i64} {
  func.func @_encdec_kernel(%arg0: i32, %arg1: memref<16x1024xf32, #tpu.memory_space<vmem>>, %arg2: memref<1024x128xbf16, #tpu.memory_space<vmem>>, %arg3: memref<1x128xf32, #tpu.memory_space<vmem>>, %arg4: memref<128x1024xbf16, #tpu.memory_space<vmem>>, %arg5: memref<1x1024xf32, #tpu.memory_space<vmem>>, %arg6: memref<16x1024xf32, #tpu.memory_space<vmem>>, %arg7: memref<16x128xf32, #tpu.memory_space<vmem>>) attributes {dimension_semantics = [#tpu.dimension_semantics<parallel>], iteration_bounds = array<i64: 1>, scalar_prefetch = 0 : i64, scratch_operands = 0 : i64, tpu.core_type = #tpu.core_type<tc>, window_params = [{transform_indices = @transform_0, window_bounds = array<i64: 16, 1024>}, {pipeline_mode = #tpu.pipeline_mode<synchronous>, transform_indices = @transform_1, window_bounds = array<i64: 1024, 128>}, {pipeline_mode = #tpu.pipeline_mode<synchronous>, transform_indices = @transform_2, window_bounds = array<i64: 1, 128>}, {pipeline_mode = #tpu.pipeline_mode<synchronous>, transform_indices = @transform_3, window_bounds = array<i64: 128, 1024>}, {pipeline_mode = #tpu.pipeline_mode<synchronous>, transform_indices = @transform_4, window_bounds = array<i64: 1, 1024>}, {transform_indices = @transform_5, window_bounds = array<i64: 16, 1024>}, {transform_indices = @transform_6, window_bounds = array<i64: 16, 128>}]} {
    %c0 = arith.constant 0 : index
    %c0_0 = arith.constant 0 : index
    %0 = vector.load %arg1[%c0, %c0_0] : memref<16x1024xf32, #tpu.memory_space<vmem>>, vector<16x1024xf32>
    %1 = arith.truncf %0 : vector<16x1024xf32> to vector<16x1024xbf16>
    %c0_1 = arith.constant 0 : index
    %c0_2 = arith.constant 0 : index
    %2 = vector.load %arg2[%c0_1, %c0_2] : memref<1024x128xbf16, #tpu.memory_space<vmem>>, vector<1024x128xbf16>
    %cst = arith.constant dense<0.000000e+00> : vector<16x128xf32>
    %3 = tpu.matmul %1, %2, %cst {dimension_numbers = #tpu.dot_dimension_numbers<[1], [0], [0], [1], [0, 0, 1, 1], [], []>} : vector<16x1024xbf16>, vector<1024x128xbf16>, vector<16x128xf32> -> vector<16x128xf32>
    %c0_3 = arith.constant 0 : index
    %c0_4 = arith.constant 0 : index
    %4 = vector.load %arg3[%c0_3, %c0_4] : memref<1x128xf32, #tpu.memory_space<vmem>>, vector<1x128xf32>
    %5 = vector.broadcast %4 : vector<1x128xf32> to vector<16x128xf32>
    %6 = arith.addf %3, %5 : vector<16x128xf32>
    %cst_5 = arith.constant 0.000000e+00 : f32
    %7 = vector.broadcast %cst_5 : f32 to vector<16x128xf32>
    %8 = arith.maximumf %6, %7 : vector<16x128xf32>
    %c0_6 = arith.constant 0 : index
    %c0_7 = arith.constant 0 : index
    %9 = vector.load %arg7[%c0_6, %c0_7] : memref<16x128xf32, #tpu.memory_space<vmem>>, vector<16x128xf32>
    tpu.vector_store %arg7[%c0_6, %c0_7], %8 {strides = array<i32>} : memref<16x128xf32, #tpu.memory_space<vmem>>, vector<16x128xf32>,
    %10 = arith.truncf %8 : vector<16x128xf32> to vector<16x128xbf16>
    %c0_8 = arith.constant 0 : index
    %c0_9 = arith.constant 0 : index
    %11 = vector.load %arg4[%c0_8, %c0_9] : memref<128x1024xbf16, #tpu.memory_space<vmem>>, vector<128x1024xbf16>
    %cst_10 = arith.constant dense<0.000000e+00> : vector<16x1024xf32>
    %12 = tpu.matmul %10, %11, %cst_10 {dimension_numbers = #tpu.dot_dimension_numbers<[1], [0], [0], [1], [0, 0, 1, 1], [], []>} : vector<16x128xbf16>, vector<128x1024xbf16>, vector<16x1024xf32> -> vector<16x1024xf32>
    %c0_11 = arith.constant 0 : index
    %c0_12 = arith.constant 0 : index
    %13 = vector.load %arg5[%c0_11, %c0_12] : memref<1x1024xf32, #tpu.memory_space<vmem>>, vector<1x1024xf32>
    %14 = vector.broadcast %13 : vector<1x1024xf32> to vector<16x1024xf32>
    %15 = arith.addf %12, %14 : vector<16x1024xf32>
    %cst_13 = arith.constant 5.000000e-01 : f32
    %16 = vector.broadcast %cst_13 : f32 to vector<16x1024xf32>
    %17 = arith.mulf %16, %15 : vector<16x1024xf32>
    %18 = math.tanh %17 : vector<16x1024xf32>
    %cst_14 = arith.constant 5.000000e-01 : f32
    %19 = vector.broadcast %cst_14 : f32 to vector<16x1024xf32>
    %20 = arith.mulf %19, %18 : vector<16x1024xf32>
    %cst_15 = arith.constant 5.000000e-01 : f32
    %21 = vector.broadcast %cst_15 : f32 to vector<16x1024xf32>
    %22 = arith.addf %20, %21 : vector<16x1024xf32>
    %c0_16 = arith.constant 0 : index
    %c0_17 = arith.constant 0 : index
    %23 = vector.load %arg6[%c0_16, %c0_17] : memref<16x1024xf32, #tpu.memory_space<vmem>>, vector<16x1024xf32>
    tpu.vector_store %arg6[%c0_16, %c0_17], %22 {strides = array<i32>} : memref<16x1024xf32, #tpu.memory_space<vmem>>, vector<16x1024xf32>,
    return
  }
  func.func @transform_0(%arg0: i32) -> (i32, i32) {
    %c0_i32 = arith.constant 0 : i32
    %c0_i32_0 = arith.constant 0 : i32
    return %arg0, %c0_i32 : i32, i32
  }
  func.func @transform_1(%arg0: i32) -> (i32, i32) {
    %c0_i32 = arith.constant 0 : i32
    %c0_i32_0 = arith.constant 0 : i32
    %c0_i32_1 = arith.constant 0 : i32
    return %c0_i32, %c0_i32_0 : i32, i32
  }
  func.func @transform_2(%arg0: i32) -> (i32, i32) {
    %c0_i32 = arith.constant 0 : i32
    %c0_i32_0 = arith.constant 0 : i32
    %c0_i32_1 = arith.constant 0 : i32
    return %c0_i32, %c0_i32_0 : i32, i32
  }
  func.func @transform_3(%arg0: i32) -> (i32, i32) {
    %c0_i32 = arith.constant 0 : i32
    %c0_i32_0 = arith.constant 0 : i32
    %c0_i32_1 = arith.constant 0 : i32
    return %c0_i32, %c0_i32_0 : i32, i32
  }
  func.func @transform_4(%arg0: i32) -> (i32, i32) {
    %c0_i32 = arith.constant 0 : i32
    %c0_i32_0 = arith.constant 0 : i32
    %c0_i32_1 = arith.constant 0 : i32
    return %c0_i32, %c0_i32_0 : i32, i32
  }
  func.func @transform_5(%arg0: i32) -> (i32, i32) {
    %c0_i32 = arith.constant 0 : i32
    %c0_i32_0 = arith.constant 0 : i32
    return %arg0, %c0_i32 : i32, i32
  }
  func.func @transform_6(%arg0: i32) -> (i32, i32) {
    %c0_i32 = arith.constant 0 : i32
    %c0_i32_0 = arith.constant 0 : i32
    return %arg0, %c0_i32 : i32, i32
  }
}

</mosaic_0001>

<llo_original>
// kernel: tpu_custom_call.1
$region0: #{tpu_custom_call.1}
  #allocation0 [shape = 'u32[]', space=smem, size = 0x4, offset = 0x4, fixed_abs, tag = 'smem constant byte address 0x4 - core index']
  #allocation1 [shape = 'u32[144,128]{1,0:T(1,128)}', space=vmem, size = 0x12000, scoped, tag = 'internal scratch']
  %s0 = inlined_call_operand.hbm [shape: f32[16,1024], index: 0, kind: input, shape index: {}]
  %s1 = inlined_call_operand.hbm [shape: bf16[1024,128], index: 1, kind: input, shape index: {}]
  %s2 = inlined_call_operand.vmem [shape: f32[1,128], index: 2, kind: input, shape index: {}]
  %s3 = inlined_call_operand.hbm [shape: bf16[128,1024], index: 3, kind: input, shape index: {}]
  %s4 = inlined_call_operand.vmem [shape: f32[1,1024], index: 4, kind: input, shape index: {}]
  %s5 = inlined_call_operand.hbm [shape: f32[16,1024], index: 5, kind: output, shape index: {0}]
  %s6 = inlined_call_operand.hbm [shape: f32[16,128], index: 6, kind: output, shape index: {1}]
  %7 = xla_tuple %s5, %s6
  %s8 = sld [smem:[#allocation0]]
  $region50: #{tpu_custom_call.1} parent=0
    _
  %s10 = ssub.s32 1, %s8
  %s11 = scalar_select 0, %s10, %s8
  $region1: #{tpu_custom_call.1} parent=0
    #allocation2 [shape = 'u8[65536]{0}', space=vmem, size = 0x10000, scoped, tag = 'input window, operand 0, single buffered']
    #allocation3 [shape = 's32[1]{0}', space=sflag, size = 0x4, scoped, tag = 'scoped memory for tpu_custom_call.1']
    #allocation4 [shape = 's32[1]{0}', space=sflag, size = 0x4, scoped, tag = 'scoped memory for tpu_custom_call.1']
    #allocation5 [shape = 'u8[262144]{0}', space=vmem, size = 0x40000, scoped, tag = 'input window, operand 1, single buffered']
    #allocation6 [shape = 's32[1]{0}', space=sflag, size = 0x4, scoped, tag = 'scoped memory for tpu_custom_call.1']
    #allocation7 [shape = 'u8[262144]{0}', space=vmem, size = 0x40000, scoped, tag = 'input window, operand 3, single buffered']
    #allocation8 [shape = 'u8[65536]{0}', space=vmem, size = 0x10000, scoped, tag = 'output window, operand 0, single buffered']
    #allocation9 [shape = 'u8[8192]{0}', space=vmem, size = 0x2000, scoped, tag = 'output window, operand 1, single buffered']
    #allocation10 [shape = 's32[1]{0}', space=sflag, size = 0x4, scoped, tag = 'scoped memory for tpu_custom_call.1']
    %12 = vsyncpa [#allocation3], 0
    %13 = vsyncpa [#allocation6], 0
    %14 = vsyncpa [#allocation4], 0
    %15 = vsyncpa [#allocation10], 0
    // Predicated region
    $region2: #{tpu_custom_call.1} parent=1 // pred_check
      _
    $region3: #{tpu_custom_call.1} parent=1 // pred_check_branch
      %17 = sbr.rel (0) target = $region5
    $region4: #{tpu_custom_call.1} parent=1 // pred_region
      %s19 = ssub.s32 2048, 2048
      %20 = vsyncadd [#allocation3], %s19
      %s21 = sshll.u32 [#allocation2], 4
      %s22 = int_to_ptr.vmem [resolvable:$true] %s21
      %27 = dma.hbm_to_vmem [thread:$0]  %s0, 2048, %s22, [#allocation3], 1024, 1024, 64
    $region5: #{tpu_custom_call.1} parent=1 // pred_fallthru
      _
    // Predicated region
    $region6: #{tpu_custom_call.1} parent=1 // pred_check
      _
    $region7: #{tpu_custom_call.1} parent=1 // pred_check_branch
      %29 = sbr.rel (0) target = $region9
    $region8: #{tpu_custom_call.1} parent=1 // pred_region
      %s31 = ssub.s32 8192, 8192
      %32 = vsyncadd [#allocation6], %s31
      %s33 = sshll.u32 [#allocation5], 4
      %s34 = int_to_ptr.vmem [resolvable:$true] %s33
      %39 = dma.hbm_to_vmem [thread:$0]  %s1, 8192, %s34, [#allocation6], 64, 64, 4
    $region9: #{tpu_custom_call.1} parent=1 // pred_fallthru
      _
    // Predicated region
    $region10: #{tpu_custom_call.1} parent=1 // pred_check
      _
    $region11: #{tpu_custom_call.1} parent=1 // pred_check_branch
      %41 = sbr.rel (0) target = $region13
    $region12: #{tpu_custom_call.1} parent=1 // pred_region
      _
    $region13: #{tpu_custom_call.1} parent=1 // pred_fallthru
      _
    // Predicated region
    $region14: #{tpu_custom_call.1} parent=1 // pred_check
      _
    $region15: #{tpu_custom_call.1} parent=1 // pred_check_branch
      %43 = sbr.rel (0) target = $region17
    $region16: #{tpu_custom_call.1} parent=1 // pred_region
      %s45 = ssub.s32 8192, 8192
      %46 = vsyncadd [#allocation6], %s45
      %s47 = sshll.u32 [#allocation7], 4
      %s48 = int_to_ptr.vmem [resolvable:$true] %s47
      %53 = dma.hbm_to_vmem [thread:$0]  %s3, 8192, %s48, [#allocation6], 512, 512, 32
    $region17: #{tpu_custom_call.1} parent=1 // pred_fallthru
      _
    // Predicated region
    $region18: #{tpu_custom_call.1} parent=1 // pred_check
      _
    $region19: #{tpu_custom_call.1} parent=1 // pred_check_branch
      %55 = sbr.rel (0) target = $region21
    $region20: #{tpu_custom_call.1} parent=1 // pred_region
      _
    $region21: #{tpu_custom_call.1} parent=1 // pred_fallthru
      _
    // Predicated region
    $region22: #{tpu_custom_call.1} parent=1 // pred_check
      _
    $region23: #{tpu_custom_call.1} parent=1 // pred_check_branch
      %57 = sbr.rel (0) target = $region25
    $region24: #{tpu_custom_call.1} parent=1 // pred_region
      %58 = dma.done [#allocation3], 2048
    $region25: #{tpu_custom_call.1} parent=1 // pred_fallthru
      _
    // Predicated region
    $region26: #{tpu_custom_call.1} parent=1 // pred_check
      _
    $region27: #{tpu_custom_call.1} parent=1 // pred_check_branch
      %60 = sbr.rel (0) target = $region29
    $region28: #{tpu_custom_call.1} parent=1 // pred_region
      %61 = dma.done [#allocation6], 8192
    $region29: #{tpu_custom_call.1} parent=1 // pred_fallthru
      _
    // Predicated region
    $region30: #{tpu_custom_call.1} parent=1 // pred_check
      _
    $region31: #{tpu_custom_call.1} parent=1 // pred_check_branch
      %63 = sbr.rel (0) target = $region33
    $region32: #{tpu_custom_call.1} parent=1 // pred_region
      %64 = dma.done [#allocation6], 8192
    $region33: #{tpu_custom_call.1} parent=1 // pred_fallthru
      _
    %v66 = vld [vmem:[#allocation2] sm:$0xff]
    %v67 = vld [vmem:[#allocation2 + $0x8] sm:$0xff]
    %v68 = vld [vmem:[#allocation2 + $0x10] sm:$0xff]
    %v69 = vld [vmem:[#allocation2 + $0x18] sm:$0xff]
    %v70 = vld [vmem:[#allocation2 + $0x20] sm:$0xff]
    %v71 = vld [vmem:[#allocation2 + $0x28] sm:$0xff]
    %v72 = vld [vmem:[#allocation2 + $0x30] sm:$0xff]
    %v73 = vld [vmem:[#allocation2 + $0x38] sm:$0xff]
    %v74 = vld [vmem:[#allocation2 + $0x40] sm:$0xff]
    %v75 = vld [vmem:[#allocation2 + $0x48] sm:$0xff]
    %v76 = vld [vmem:[#allocation2 + $0x50] sm:$0xff]
    %v77 = vld [vmem:[#allocation2 + $0x58] sm:$0xff]
    %v78 = vld [vmem:[#allocation2 + $0x60] sm:$0xff]
    %v79 = vld [vmem:[#allocation2 + $0x68] sm:$0xff]
    %v80 = vld [vmem:[#allocation2 + $0x70] sm:$0xff]
    %v81 = vld [vmem:[#allocation2 + $0x78] sm:$0xff]
    %v82 = vpack.c.bf16 %v74, %v66
    %v83 = vpack.c.bf16 %v75, %v67
    %v84 = vpack.c.bf16 %v76, %v68
    %v85 = vpack.c.bf16 %v77, %v69
    %v86 = vpack.c.bf16 %v78, %v70
    %v87 = vpack.c.bf16 %v79, %v71
    %v88 = vpack.c.bf16 %v80, %v72
    %v89 = vpack.c.bf16 %v81, %v73
    %v90 = vld [vmem:[#allocation5] sm:$0xf]
    %v91 = vld [vmem:[#allocation5 + $0x4] sm:$0xf]
    %v92 = vld [vmem:[#allocation5 + $0x8] sm:$0xf]
    %v93 = vld [vmem:[#allocation5 + $0xc] sm:$0xf]
    %v94 = vld [vmem:[#allocation5 + $0x10] sm:$0xf]
    %v95 = vld [vmem:[#allocation5 + $0x14] sm:$0xf]
    %v96 = vld [vmem:[#allocation5 + $0x18] sm:$0xf]
    %v97 = vld [vmem:[#allocation5 + $0x1c] sm:$0xf]
    %v98 = vld [vmem:[#allocation5 + $0x20] sm:$0xf]
    %v99 = vld [vmem:[#allocation5 + $0x24] sm:$0xf]
    %v100 = vld [vmem:[#allocation5 + $0x28] sm:$0xf]
    %v101 = vld [vmem:[#allocation5 + $0x2c] sm:$0xf]
    %v102 = vld [vmem:[#allocation5 + $0x30] sm:$0xf]
    %v103 = vld [vmem:[#allocation5 + $0x34] sm:$0xf]
    %v104 = vld [vmem:[#allocation5 + $0x38] sm:$0xf]
    %v105 = vld [vmem:[#allocation5 + $0x3c] sm:$0xf]
    %v106 = vld [vmem:[#allocation5 + $0x40] sm:$0xf]
    %v107 = vld [vmem:[#allocation5 + $0x44] sm:$0xf]
    %v108 = vld [vmem:[#allocation5 + $0x48] sm:$0xf]
    %v109 = vld [vmem:[#allocation5 + $0x4c] sm:$0xf]
    %v110 = vld [vmem:[#allocation5 + $0x50] sm:$0xf]
    %v111 = vld [vmem:[#allocation5 + $0x54] sm:$0xf]
    %v112 = vld [vmem:[#allocation5 + $0x58] sm:$0xf]
    %v113 = vld [vmem:[#allocation5 + $0x5c] sm:$0xf]
    %v114 = vld [vmem:[#allocation5 + $0x60] sm:$0xf]
    %v115 = vld [vmem:[#allocation5 + $0x64] sm:$0xf]
    %v116 = vld [vmem:[#allocation5 + $0x68] sm:$0xf]
    %v117 = vld [vmem:[#allocation5 + $0x6c] sm:$0xf]
    %v118 = vld [vmem:[#allocation5 + $0x70] sm:$0xf]
    %v119 = vld [vmem:[#allocation5 + $0x74] sm:$0xf]
    %v120 = vld [vmem:[#allocation5 + $0x78] sm:$0xf]
    %v121 = vld [vmem:[#allocation5 + $0x7c] sm:$0xf]
    %v122 = vld [vmem:[#allocation5 + $0x80] sm:$0xf]
    %v123 = vld [vmem:[#allocation5 + $0x84] sm:$0xf]
    %v124 = vld [vmem:[#allocation5 + $0x88] sm:$0xf]
    %v125 = vld [vmem:[#allocation5 + $0x8c] sm:$0xf]
    %v126 = vld [vmem:[#allocation5 + $0x90] sm:$0xf]
    %v127 = vld [vmem:[#allocation5 + $0x94] sm:$0xf]
    %v128 = vld [vmem:[#allocation5 + $0x98] sm:$0xf]
    %v129 = vld [vmem:[#allocation5 + $0x9c] sm:$0xf]
    %v130 = vld [vmem:[#allocation5 + $0xa0] sm:$0xf]
    %v131 = vld [vmem:[#allocation5 + $0xa4] sm:$0xf]
    %v132 = vld [vmem:[#allocation5 + $0xa8] sm:$0xf]
    %v133 = vld [vmem:[#allocation5 + $0xac] sm:$0xf]
    %v134 = vld [vmem:[#allocation5 + $0xb0] sm:$0xf]
    %v135 = vld [vmem:[#allocation5 + $0xb4] sm:$0xf]
    %v136 = vld [vmem:[#allocation5 + $0xb8] sm:$0xf]
    %v137 = vld [vmem:[#allocation5 + $0xbc] sm:$0xf]
    %v138 = vld [vmem:[#allocation5 + $0xc0] sm:$0xf]
    %v139 = vld [vmem:[#allocation5 + $0xc4] sm:$0xf]
    %v140 = vld [vmem:[#allocation5 + $0xc8] sm:$0xf]
    %v141 = vld [vmem:[#allocation5 + $0xcc] sm:$0xf]
    %v142 = vld [vmem:[#allocation5 + $0xd0] sm:$0xf]
    %v143 = vld [vmem:[#allocation5 + $0xd4] sm:$0xf]
    %v144 = vld [vmem:[#allocation5 + $0xd8] sm:$0xf]
    %v145 = vld [vmem:[#allocation5 + $0xdc] sm:$0xf]
    %v146 = vld [vmem:[#allocation5 + $0xe0] sm:$0xf]
    %v147 = vld [vmem:[#allocation5 + $0xe4] sm:$0xf]
    %v148 = vld [vmem:[#allocation5 + $0xe8] sm:$0xf]
    %v149 = vld [vmem:[#allocation5 + $0xec] sm:$0xf]
    %v150 = vld [vmem:[#allocation5 + $0xf0] sm:$0xf]
    %v151 = vld [vmem:[#allocation5 + $0xf4] sm:$0xf]
    %v152 = vld [vmem:[#allocation5 + $0xf8] sm:$0xf]
    %v153 = vld [vmem:[#allocation5 + $0xfc] sm:$0xf]
    %v154 = vld [vmem:[#allocation5 + $0x100] sm:$0xf]
    %v155 = vld [vmem:[#allocation5 + $0x104] sm:$0xf]
    %v156 = vld [vmem:[#allocation5 + $0x108] sm:$0xf]
    %v157 = vld [vmem:[#allocation5 + $0x10c] sm:$0xf]
    %v158 = vld [vmem:[#allocation5 + $0x110] sm:$0xf]
    %v159 = vld [vmem:[#allocation5 + $0x114] sm:$0xf]
    %v160 = vld [vmem:[#allocation5 + $0x118] sm:$0xf]
    %v161 = vld [vmem:[#allocation5 + $0x11c] sm:$0xf]
    %v162 = vld [vmem:[#allocation5 + $0x120] sm:$0xf]
    %v163 = vld [vmem:[#allocation5 + $0x124] sm:$0xf]
    %v164 = vld [vmem:[#allocation5 + $0x128] sm:$0xf]
    %v165 = vld [vmem:[#allocation5 + $0x12c] sm:$0xf]
    %v166 = vld [vmem:[#allocation5 + $0x130] sm:$0xf]
    %v167 = vld [vmem:[#allocation5 + $0x134] sm:$0xf]
    %v168 = vld [vmem:[#allocation5 + $0x138] sm:$0xf]
    %v169 = vld [vmem:[#allocation5 + $0x13c] sm:$0xf]
    %v170 = vld [vmem:[#allocation5 + $0x140] sm:$0xf]
    %v171 = vld [vmem:[#allocation5 + $0x144] sm:$0xf]
    %v172 = vld [vmem:[#allocation5 + $0x148] sm:$0xf]
    %v173 = vld [vmem:[#allocation5 + $0x14c] sm:$0xf]
    %v174 = vld [vmem:[#allocation5 + $0x150] sm:$0xf]
    %v175 = vld [vmem:[#allocation5 + $0x154] sm:$0xf]
    %v176 = vld [vmem:[#allocation5 + $0x158] sm:$0xf]
    %v177 = vld [vmem:[#allocation5 + $0x15c] sm:$0xf]
    %v178 = vld [vmem:[#allocation5 + $0x160] sm:$0xf]
    %v179 = vld [vmem:[#allocation5 + $0x164] sm:$0xf]
    %v180 = vld [vmem:[#allocation5 + $0x168] sm:$0xf]
    %v181 = vld [vmem:[#allocation5 + $0x16c] sm:$0xf]
    %v182 = vld [vmem:[#allocation5 + $0x170] sm:$0xf]
    %v183 = vld [vmem:[#allocation5 + $0x174] sm:$0xf]
    %v184 = vld [vmem:[#allocation5 + $0x178] sm:$0xf]
    %v185 = vld [vmem:[#allocation5 + $0x17c] sm:$0xf]
    %v186 = vld [vmem:[#allocation5 + $0x180] sm:$0xf]
    %v187 = vld [vmem:[#allocation5 + $0x184] sm:$0xf]
    %v188 = vld [vmem:[#allocation5 + $0x188] sm:$0xf]
    %v189 = vld [vmem:[#allocation5 + $0x18c] sm:$0xf]
    %v190 = vld [vmem:[#allocation5 + $0x190] sm:$0xf]
    %v191 = vld [vmem:[#allocation5 + $0x194] sm:$0xf]
    %v192 = vld [vmem:[#allocation5 + $0x198] sm:$0xf]
    %v193 = vld [vmem:[#allocation5 + $0x19c] sm:$0xf]
    %v194 = vld [vmem:[#allocation5 + $0x1a0] sm:$0xf]
    %v195 = vld [vmem:[#allocation5 + $0x1a4] sm:$0xf]
    %v196 = vld [vmem:[#allocation5 + $0x1a8] sm:$0xf]
    %v197 = vld [vmem:[#allocation5 + $0x1ac] sm:$0xf]
    %v198 = vld [vmem:[#allocation5 + $0x1b0] sm:$0xf]
    %v199 = vld [vmem:[#allocation5 + $0x1b4] sm:$0xf]
    %v200 = vld [vmem:[#allocation5 + $0x1b8] sm:$0xf]
    %v201 = vld [vmem:[#allocation5 + $0x1bc] sm:$0xf]
    %v202 = vld [vmem:[#allocation5 + $0x1c0] sm:$0xf]
    %v203 = vld [vmem:[#allocation5 + $0x1c4] sm:$0xf]
    %v204 = vld [vmem:[#allocation5 + $0x1c8] sm:$0xf]
    %v205 = vld [vmem:[#allocation5 + $0x1cc] sm:$0xf]
    %v206 = vld [vmem:[#allocation5 + $0x1d0] sm:$0xf]
    %v207 = vld [vmem:[#allocation5 + $0x1d4] sm:$0xf]
    %v208 = vld [vmem:[#allocation5 + $0x1d8] sm:$0xf]
    %v209 = vld [vmem:[#allocation5 + $0x1dc] sm:$0xf]
    %v210 = vld [vmem:[#allocation5 + $0x1e0] sm:$0xf]
    %v211 = vld [vmem:[#allocation5 + $0x1e4] sm:$0xf]
    %v212 = vld [vmem:[#allocation5 + $0x1e8] sm:$0xf]
    %v213 = vld [vmem:[#allocation5 + $0x1ec] sm:$0xf]
    %v214 = vld [vmem:[#allocation5 + $0x1f0] sm:$0xf]
    %v215 = vld [vmem:[#allocation5 + $0x1f4] sm:$0xf]
    %v216 = vld [vmem:[#allocation5 + $0x1f8] sm:$0xf]
    %v217 = vld [vmem:[#allocation5 + $0x1fc] sm:$0xf]
    %v218 = vld [vmem:[%s2] sm:$0x1]
    %v220 = vlaneseq
    %v221 = vshrl.u32 %v220, 7
    %v222 = vsub.s32 0, %v221
    %v223 = vrot.slane %v218, %v222
    %v353 = vunpack.c.l.b16 %v90
    %v354 = vunpack.c.l.b16 %v91
    %v355 = vunpack.c.l.b16 %v92
    %v356 = vunpack.c.l.b16 %v93
    %v357 = vunpack.c.l.b16 %v94
    %v358 = vunpack.c.l.b16 %v95
    %v359 = vunpack.c.l.b16 %v96
    %v360 = vunpack.c.l.b16 %v97
    %v361 = vunpack.c.l.b16 %v98
    %v362 = vunpack.c.l.b16 %v99
    %v363 = vunpack.c.l.b16 %v100
    %v364 = vunpack.c.l.b16 %v101
    %v365 = vunpack.c.l.b16 %v102
    %v366 = vunpack.c.l.b16 %v103
    %v367 = vunpack.c.l.b16 %v104
    %v368 = vunpack.c.l.b16 %v105
    %v369 = vunpack.c.l.b16 %v106
    %v370 = vunpack.c.l.b16 %v107
    %v371 = vunpack.c.l.b16 %v108
    %v372 = vunpack.c.l.b16 %v109
    %v373 = vunpack.c.l.b16 %v110
    %v374 = vunpack.c.l.b16 %v111
    %v375 = vunpack.c.l.b16 %v112
    %v376 = vunpack.c.l.b16 %v113
    %v377 = vunpack.c.l.b16 %v114
    %v378 = vunpack.c.l.b16 %v115
    %v379 = vunpack.c.l.b16 %v116
    %v380 = vunpack.c.l.b16 %v117
    %v381 = vunpack.c.l.b16 %v118
    %v382 = vunpack.c.l.b16 %v119
    %v383 = vunpack.c.l.b16 %v120
    %v384 = vunpack.c.l.b16 %v121
    %v385 = vunpack.c.l.b16 %v122
    %v386 = vunpack.c.l.b16 %v123
    %v387 = vunpack.c.l.b16 %v124
    %v388 = vunpack.c.l.b16 %v125
    %v389 = vunpack.c.l.b16 %v126
    %v390 = vunpack.c.l.b16 %v127
    %v391 = vunpack.c.l.b16 %v128
    %v392 = vunpack.c.l.b16 %v129
    %v393 = vunpack.c.l.b16 %v130
    %v394 = vunpack.c.l.b16 %v131
    %v395 = vunpack.c.l.b16 %v132
    %v396 = vunpack.c.l.b16 %v133
    %v397 = vunpack.c.l.b16 %v134
    %v398 = vunpack.c.l.b16 %v135
    %v399 = vunpack.c.l.b16 %v136
    %v400 = vunpack.c.l.b16 %v137
    %v401 = vunpack.c.l.b16 %v138
    %v402 = vunpack.c.l.b16 %v139
    %v403 = vunpack.c.l.b16 %v140
    %v404 = vunpack.c.l.b16 %v141
    %v405 = vunpack.c.l.b16 %v142
    %v406 = vunpack.c.l.b16 %v143
    %v407 = vunpack.c.l.b16 %v144
    %v408 = vunpack.c.l.b16 %v145
    %v409 = vunpack.c.l.b16 %v146
    %v410 = vunpack.c.l.b16 %v147
    %v411 = vunpack.c.l.b16 %v148
    %v412 = vunpack.c.l.b16 %v149
    %v413 = vunpack.c.l.b16 %v150
    %v414 = vunpack.c.l.b16 %v151
    %v415 = vunpack.c.l.b16 %v152
    %v416 = vunpack.c.l.b16 %v153
    %v417 = vunpack.c.l.b16 %v154
    %v418 = vunpack.c.l.b16 %v155
    %v419 = vunpack.c.l.b16 %v156
    %v420 = vunpack.c.l.b16 %v157
    %v421 = vunpack.c.l.b16 %v158
    %v422 = vunpack.c.l.b16 %v159
    %v423 = vunpack.c.l.b16 %v160
    %v424 = vunpack.c.l.b16 %v161
    %v425 = vunpack.c.l.b16 %v162
    %v426 = vunpack.c.l.b16 %v163
    %v427 = vunpack.c.l.b16 %v164
    %v428 = vunpack.c.l.b16 %v165
    %v429 = vunpack.c.l.b16 %v166
    %v430 = vunpack.c.l.b16 %v167
    %v431 = vunpack.c.l.b16 %v168
    %v432 = vunpack.c.l.b16 %v169
    %v433 = vunpack.c.l.b16 %v170
    %v434 = vunpack.c.l.b16 %v171
    %v435 = vunpack.c.l.b16 %v172
    %v436 = vunpack.c.l.b16 %v173
    %v437 = vunpack.c.l.b16 %v174
    %v438 = vunpack.c.l.b16 %v175
    %v439 = vunpack.c.l.b16 %v176
    %v440 = vunpack.c.l.b16 %v177
    %v441 = vunpack.c.l.b16 %v178
    %v442 = vunpack.c.l.b16 %v179
    %v443 = vunpack.c.l.b16 %v180
    %v444 = vunpack.c.l.b16 %v181
    %v445 = vunpack.c.l.b16 %v182
    %v446 = vunpack.c.l.b16 %v183
    %v447 = vunpack.c.l.b16 %v184
    %v448 = vunpack.c.l.b16 %v185
    %v449 = vunpack.c.l.b16 %v186
    %v450 = vunpack.c.l.b16 %v187
    %v451 = vunpack.c.l.b16 %v188
    %v452 = vunpack.c.l.b16 %v189
    %v453 = vunpack.c.l.b16 %v190
    %v454 = vunpack.c.l.b16 %v191
    %v455 = vunpack.c.l.b16 %v192
    %v456 = vunpack.c.l.b16 %v193
    %v457 = vunpack.c.l.b16 %v194
    %v458 = vunpack.c.l.b16 %v195
    %v459 = vunpack.c.l.b16 %v196
    %v460 = vunpack.c.l.b16 %v197
    %v461 = vunpack.c.l.b16 %v198
    %v462 = vunpack.c.l.b16 %v199
    %v463 = vunpack.c.l.b16 %v200
    %v464 = vunpack.c.l.b16 %v201
    %v465 = vunpack.c.l.b16 %v202
    %v466 = vunpack.c.l.b16 %v203
    %v467 = vunpack.c.l.b16 %v204
    %v468 = vunpack.c.l.b16 %v205
    %v469 = vunpack.c.l.b16 %v206
    %v470 = vunpack.c.l.b16 %v207
    %v471 = vunpack.c.l.b16 %v208
    %v472 = vunpack.c.l.b16 %v209
    %v473 = vunpack.c.l.b16 %v210
    %v474 = vunpack.c.l.b16 %v211
    %v475 = vunpack.c.l.b16 %v212
    %v476 = vunpack.c.l.b16 %v213
    %v477 = vunpack.c.l.b16 %v214
    %v478 = vunpack.c.l.b16 %v215
    %v479 = vunpack.c.l.b16 %v216
    %v480 = vunpack.c.l.b16 %v217
    %v481 = vpack.c.b16 %v354, %v353
    %v482 = vpack.c.b16 %v356, %v355
    %v483 = vpack.c.b16 %v358, %v357
    %v484 = vpack.c.b16 %v360, %v359
    %v485 = vpack.c.b16 %v362, %v361
    %v486 = vpack.c.b16 %v364, %v363
    %v487 = vpack.c.b16 %v366, %v365
    %v488 = vpack.c.b16 %v368, %v367
    %v489 = vpack.c.b16 %v370, %v369
    %v490 = vpack.c.b16 %v372, %v371
    %v491 = vpack.c.b16 %v374, %v373
    %v492 = vpack.c.b16 %v376, %v375
    %v493 = vpack.c.b16 %v378, %v377
    %v494 = vpack.c.b16 %v380, %v379
    %v495 = vpack.c.b16 %v382, %v381
    %v496 = vpack.c.b16 %v384, %v383
    %v497 = vpack.c.b16 %v386, %v385
    %v498 = vpack.c.b16 %v388, %v387
    %v499 = vpack.c.b16 %v390, %v389
    %v500 = vpack.c.b16 %v392, %v391
    %v501 = vpack.c.b16 %v394, %v393
    %v502 = vpack.c.b16 %v396, %v395
    %v503 = vpack.c.b16 %v398, %v397
    %v504 = vpack.c.b16 %v400, %v399
    %v505 = vpack.c.b16 %v402, %v401
    %v506 = vpack.c.b16 %v404, %v403
    %v507 = vpack.c.b16 %v406, %v405
    %v508 = vpack.c.b16 %v408, %v407
    %v509 = vpack.c.b16 %v410, %v409
    %v510 = vpack.c.b16 %v412, %v411
    %v511 = vpack.c.b16 %v414, %v413
    %v512 = vpack.c.b16 %v416, %v415
    %v513 = vpack.c.b16 %v418, %v417
    %v514 = vpack.c.b16 %v420, %v419
    %v515 = vpack.c.b16 %v422, %v421
    %v516 = vpack.c.b16 %v424, %v423
    %v517 = vpack.c.b16 %v426, %v425
    %v518 = vpack.c.b16 %v428, %v427
    %v519 = vpack.c.b16 %v430, %v429
    %v520 = vpack.c.b16 %v432, %v431
    %v521 = vpack.c.b16 %v434, %v433
    %v522 = vpack.c.b16 %v436, %v435
    %v523 = vpack.c.b16 %v438, %v437
    %v524 = vpack.c.b16 %v440, %v439
    %v525 = vpack.c.b16 %v442, %v441
    %v526 = vpack.c.b16 %v444, %v443
    %v527 = vpack.c.b16 %v446, %v445
    %v528 = vpack.c.b16 %v448, %v447
    %v529 = vpack.c.b16 %v450, %v449
    %v530 = vpack.c.b16 %v452, %v451
    %v531 = vpack.c.b16 %v454, %v453
    %v532 = vpack.c.b16 %v456, %v455
    %v533 = vpack.c.b16 %v458, %v457
    %v534 = vpack.c.b16 %v460, %v459
    %v535 = vpack.c.b16 %v462, %v461
    %v536 = vpack.c.b16 %v464, %v463
    %v537 = vpack.c.b16 %v466, %v465
    %v538 = vpack.c.b16 %v468, %v467
    %v539 = vpack.c.b16 %v470, %v469
    %v540 = vpack.c.b16 %v472, %v471
    %v541 = vpack.c.b16 %v474, %v473
    %v542 = vpack.c.b16 %v476, %v475
    %v543 = vpack.c.b16 %v478, %v477
    %v544 = vpack.c.b16 %v480, %v479
    %609 = vmatprep.subr.bf16.mxu0 0
    %610 = vmatpush1.bf16.msra.mxu0 %v481
    %611 = vmatprep.subr.bf16.mxu0 0
    %612 = vmatpush1.bf16.msra.mxu0 %v482
    %613 = vmatprep.subr.bf16.mxu0 0
    %614 = vmatpush1.bf16.msra.mxu0 %v483
    %615 = vmatprep.subr.bf16.mxu0 0
    %616 = vmatpush1.bf16.msra.mxu0 %v484
    %617 = vmatprep.subr.bf16.mxu0 0
    %618 = vmatpush1.bf16.msra.mxu0 %v485
    %619 = vmatprep.subr.bf16.mxu0 0
    %620 = vmatpush1.bf16.msra.mxu0 %v486
    %621 = vmatprep.subr.bf16.mxu0 0
    %622 = vmatpush1.bf16.msra.mxu0 %v487
    %623 = vmatprep.subr.bf16.mxu0 0
    %624 = vmatpush1.bf16.msra.mxu0 %v488
    %625 = vmatprep.subr.bf16.mxu0 0
    %626 = vmatpush1.bf16.msra.mxu0 %v489
    %627 = vmatprep.subr.bf16.mxu0 0
    %628 = vmatpush1.bf16.msra.mxu0 %v490
    %629 = vmatprep.subr.bf16.mxu0 0
    %630 = vmatpush1.bf16.msra.mxu0 %v491
    %631 = vmatprep.subr.bf16.mxu0 0
    %632 = vmatpush1.bf16.msra.mxu0 %v492
    %633 = vmatprep.subr.bf16.mxu0 0
    %634 = vmatpush1.bf16.msra.mxu0 %v493
    %635 = vmatprep.subr.bf16.mxu0 0
    %636 = vmatpush1.bf16.msra.mxu0 %v494
    %637 = vmatprep.subr.bf16.mxu0 0
    %638 = vmatpush1.bf16.msra.mxu0 %v495
    %639 = vmatprep.subr.bf16.mxu0 0
    %640 = vmatpush1.bf16.msra.mxu0 %v496
    %641 = vmatprep.mubr.bf16.mxu0 %v83
    %642 = vmatmul.mubr.bf16.gmra.mrb[0].mxu0 %v82
    %v643 = vpop.f32.mrb[0].mxu0
    %v644 = vadd.f32 %v223, %v643
    %v645 = vpop.f32.mrb[0].mxu0
    %v646 = vpop.f32.mrb[0].mxu0
    %v647 = vadd.f32 %v223, %v646
    %v648 = vpop.f32.mrb[0].mxu0
    %649 = vdwg.mxu0
    %650 = vmatprep.subr.bf16.mxu0 0
    %651 = vmatpush1.bf16.msra.mxu0 %v497
    %652 = vmatprep.subr.bf16.mxu0 0
    %653 = vmatpush1.bf16.msra.mxu0 %v498
    %654 = vmatprep.subr.bf16.mxu0 0
    %655 = vmatpush1.bf16.msra.mxu0 %v499
    %656 = vmatprep.subr.bf16.mxu0 0
    %657 = vmatpush1.bf16.msra.mxu0 %v500
    %658 = vmatprep.subr.bf16.mxu0 0
    %659 = vmatpush1.bf16.msra.mxu0 %v501
    %660 = vmatprep.subr.bf16.mxu0 0
    %661 = vmatpush1.bf16.msra.mxu0 %v502
    %662 = vmatprep.subr.bf16.mxu0 0
    %663 = vmatpush1.bf16.msra.mxu0 %v503
    %664 = vmatprep.subr.bf16.mxu0 0
    %665 = vmatpush1.bf16.msra.mxu0 %v504
    %666 = vmatprep.subr.bf16.mxu0 0
    %667 = vmatpush1.bf16.msra.mxu0 %v505
    %668 = vmatprep.subr.bf16.mxu0 0
    %669 = vmatpush1.bf16.msra.mxu0 %v506
    %670 = vmatprep.subr.bf16.mxu0 0
    %671 = vmatpush1.bf16.msra.mxu0 %v507
    %672 = vmatprep.subr.bf16.mxu0 0
    %673 = vmatpush1.bf16.msra.mxu0 %v508
    %674 = vmatprep.subr.bf16.mxu0 0
    %675 = vmatpush1.bf16.msra.mxu0 %v509
    %676 = vmatprep.subr.bf16.mxu0 0
    %677 = vmatpush1.bf16.msra.mxu0 %v510
    %678 = vmatprep.subr.bf16.mxu0 0
    %679 = vmatpush1.bf16.msra.mxu0 %v511
    %680 = vmatprep.subr.bf16.mxu0 0
    %681 = vmatpush1.bf16.msra.mxu0 %v512
    %682 = vmatprep.mubr.bf16.mxu0 %v85
    %683 = vmatmul.mubr.bf16.gmra.mrb[0].mxu0 %v84
    %v684 = vpop.f32.mrb[0].mxu0
    %v685 = vadd.f32 %v644, %v684
    %v686 = vpop.f32.mrb[0].mxu0
    %v687 = vpop.f32.mrb[0].mxu0
    %v688 = vadd.f32 %v647, %v687
    %v689 = vpop.f32.mrb[0].mxu0
    %690 = vdwg.mxu0
    %691 = vmatprep.subr.bf16.mxu0 0
    %692 = vmatpush1.bf16.msra.mxu0 %v513
    %693 = vmatprep.subr.bf16.mxu0 0
    %694 = vmatpush1.bf16.msra.mxu0 %v514
    %695 = vmatprep.subr.bf16.mxu0 0
    %696 = vmatpush1.bf16.msra.mxu0 %v515
    %697 = vmatprep.subr.bf16.mxu0 0
    %698 = vmatpush1.bf16.msra.mxu0 %v516
    %699 = vmatprep.subr.bf16.mxu0 0
    %700 = vmatpush1.bf16.msra.mxu0 %v517
    %701 = vmatprep.subr.bf16.mxu0 0
    %702 = vmatpush1.bf16.msra.mxu0 %v518
    %703 = vmatprep.subr.bf16.mxu0 0
    %704 = vmatpush1.bf16.msra.mxu0 %v519
    %705 = vmatprep.subr.bf16.mxu0 0
    %706 = vmatpush1.bf16.msra.mxu0 %v520
    %707 = vmatprep.subr.bf16.mxu0 0
    %708 = vmatpush1.bf16.msra.mxu0 %v521
    %709 = vmatprep.subr.bf16.mxu0 0
    %710 = vmatpush1.bf16.msra.mxu0 %v522
    %711 = vmatprep.subr.bf16.mxu0 0
    %712 = vmatpush1.bf16.msra.mxu0 %v523
    %713 = vmatprep.subr.bf16.mxu0 0
    %714 = vmatpush1.bf16.msra.mxu0 %v524
    %715 = vmatprep.subr.bf16.mxu0 0
    %716 = vmatpush1.bf16.msra.mxu0 %v525
    %717 = vmatprep.subr.bf16.mxu0 0
    %718 = vmatpush1.bf16.msra.mxu0 %v526
    %719 = vmatprep.subr.bf16.mxu0 0
    %720 = vmatpush1.bf16.msra.mxu0 %v527
    %721 = vmatprep.subr.bf16.mxu0 0
    %722 = vmatpush1.bf16.msra.mxu0 %v528
    %723 = vmatprep.mubr.bf16.mxu0 %v87
    %724 = vmatmul.mubr.bf16.gmra.mrb[0].mxu0 %v86
    %v725 = vpop.f32.mrb[0].mxu0
    %v726 = vadd.f32 %v685, %v725
    %v727 = vpop.f32.mrb[0].mxu0
    %v728 = vpop.f32.mrb[0].mxu0
    %v729 = vadd.f32 %v688, %v728
    %v730 = vpop.f32.mrb[0].mxu0
    %731 = vdwg.mxu0
    %732 = vmatprep.subr.bf16.mxu0 0
    %733 = vmatpush1.bf16.msra.mxu0 %v529
    %734 = vmatprep.subr.bf16.mxu0 0
    %735 = vmatpush1.bf16.msra.mxu0 %v530
    %736 = vmatprep.subr.bf16.mxu0 0
    %737 = vmatpush1.bf16.msra.mxu0 %v531
    %738 = vmatprep.subr.bf16.mxu0 0
    %739 = vmatpush1.bf16.msra.mxu0 %v532
    %740 = vmatprep.subr.bf16.mxu0 0
    %741 = vmatpush1.bf16.msra.mxu0 %v533
    %742 = vmatprep.subr.bf16.mxu0 0
    %743 = vmatpush1.bf16.msra.mxu0 %v534
    %744 = vmatprep.subr.bf16.mxu0 0
    %745 = vmatpush1.bf16.msra.mxu0 %v535
    %746 = vmatprep.subr.bf16.mxu0 0
    %747 = vmatpush1.bf16.msra.mxu0 %v536
    %748 = vmatprep.subr.bf16.mxu0 0
    %749 = vmatpush1.bf16.msra.mxu0 %v537
    %750 = vmatprep.subr.bf16.mxu0 0
    %751 = vmatpush1.bf16.msra.mxu0 %v538
    %752 = vmatprep.subr.bf16.mxu0 0
    %753 = vmatpush1.bf16.msra.mxu0 %v539
    %754 = vmatprep.subr.bf16.mxu0 0
    %755 = vmatpush1.bf16.msra.mxu0 %v540
    %756 = vmatprep.subr.bf16.mxu0 0
    %757 = vmatpush1.bf16.msra.mxu0 %v541
    %758 = vmatprep.subr.bf16.mxu0 0
    %759 = vmatpush1.bf16.msra.mxu0 %v542
    %760 = vmatprep.subr.bf16.mxu0 0
    %761 = vmatpush1.bf16.msra.mxu0 %v543
    %762 = vmatprep.subr.bf16.mxu0 0
    %763 = vmatpush1.bf16.msra.mxu0 %v544
    %764 = vmatprep.mubr.bf16.mxu0 %v89
    %765 = vmatmul.mubr.bf16.gmra.mrb[0].mxu0 %v88
    %v766 = vpop.f32.mrb[0].mxu0
    %v767 = vadd.f32 %v726, %v766
    %v768 = vpop.f32.mrb[0].mxu0
    %v769 = vpop.f32.mrb[0].mxu0
    %v770 = vadd.f32 %v729, %v769
    %v771 = vpop.f32.mrb[0].mxu0
    %772 = vdwg.mxu0
    %v773 = vmax.f32 %v767, 0.0
    %v774 = vmax.f32 %v770, 0.0
    %775 = vst [vmem:[#allocation9] sm:$0xff] %v773
    %776 = vst [vmem:[#allocation9 + $0x8] sm:$0xff] %v774
    %v777 = vpack.c.bf16 %v774, %v773
    %v778 = vld [vmem:[#allocation7] sm:$0xff]
    %v779 = vld [vmem:[#allocation7 + $0x8] sm:$0xff]
    %v780 = vld [vmem:[#allocation7 + $0x10] sm:$0xff]
    %v781 = vld [vmem:[#allocation7 + $0x18] sm:$0xff]
    %v782 = vld [vmem:[#allocation7 + $0x20] sm:$0xff]
    %v783 = vld [vmem:[#allocation7 + $0x28] sm:$0xff]
    %v784 = vld [vmem:[#allocation7 + $0x30] sm:$0xff]
    %v785 = vld [vmem:[#allocation7 + $0x38] sm:$0xff]
    %v786 = vld [vmem:[#allocation7 + $0x40] sm:$0xff]
    %v787 = vld [vmem:[#allocation7 + $0x48] sm:$0xff]
    %v788 = vld [vmem:[#allocation7 + $0x50] sm:$0xff]
    %v789 = vld [vmem:[#allocation7 + $0x58] sm:$0xff]
    %v790 = vld [vmem:[#allocation7 + $0x60] sm:$0xff]
    %v791 = vld [vmem:[#allocation7 + $0x68] sm:$0xff]
    %v792 = vld [vmem:[#allocation7 + $0x70] sm:$0xff]
    %v793 = vld [vmem:[#allocation7 + $0x78] sm:$0xff]
    %v794 = vld [vmem:[#allocation7 + $0x80] sm:$0xff]
    %v795 = vld [vmem:[#allocation7 + $0x88] sm:$0xff]
    %v796 = vld [vmem:[#allocation7 + $0x90] sm:$0xff]
    %v797 = vld [vmem:[#allocation7 + $0x98] sm:$0xff]
    %v798 = vld [vmem:[#allocation7 + $0xa0] sm:$0xff]
    %v799 = vld [vmem:[#allocation7 + $0xa8] sm:$0xff]
    %v800 = vld [vmem:[#allocation7 + $0xb0] sm:$0xff]
    %v801 = vld [vmem:[#allocation7 + $0xb8] sm:$0xff]
    %v802 = vld [vmem:[#allocation7 + $0xc0] sm:$0xff]
    %v803 = vld [vmem:[#allocation7 + $0xc8] sm:$0xff]
    %v804 = vld [vmem:[#allocation7 + $0xd0] sm:$0xff]
    %v805 = vld [vmem:[#allocation7 + $0xd8] sm:$0xff]
    %v806 = vld [vmem:[#allocation7 + $0xe0] sm:$0xff]
    %v807 = vld [vmem:[#allocation7 + $0xe8] sm:$0xff]
    %v808 = vld [vmem:[#allocation7 + $0xf0] sm:$0xff]
    %v809 = vld [vmem:[#allocation7 + $0xf8] sm:$0xff]
    %v810 = vld [vmem:[#allocation7 + $0x100] sm:$0xff]
    %v811 = vld [vmem:[#allocation7 + $0x108] sm:$0xff]
    %v812 = vld [vmem:[#allocation7 + $0x110] sm:$0xff]
    %v813 = vld [vmem:[#allocation7 + $0x118] sm:$0xff]
    %v814 = vld [vmem:[#allocation7 + $0x120] sm:$0xff]
    %v815 = vld [vmem:[#allocation7 + $0x128] sm:$0xff]
    %v816 = vld [vmem:[#allocation7 + $0x130] sm:$0xff]
    %v817 = vld [vmem:[#allocation7 + $0x138] sm:$0xff]
    %v818 = vld [vmem:[#allocation7 + $0x140] sm:$0xff]
    %v819 = vld [vmem:[#allocation7 + $0x148] sm:$0xff]
    %v820 = vld [vmem:[#allocation7 + $0x150] sm:$0xff]
    %v821 = vld [vmem:[#allocation7 + $0x158] sm:$0xff]
    %v822 = vld [vmem:[#allocation7 + $0x160] sm:$0xff]
    %v823 = vld [vmem:[#allocation7 + $0x168] sm:$0xff]
    %v824 = vld [vmem:[#allocation7 + $0x170] sm:$0xff]
    %v825 = vld [vmem:[#allocation7 + $0x178] sm:$0xff]
    %v826 = vld [vmem:[#allocation7 + $0x180] sm:$0xff]
    %v827 = vld [vmem:[#allocation7 + $0x188] sm:$0xff]
    %v828 = vld [vmem:[#allocation7 + $0x190] sm:$0xff]
    %v829 = vld [vmem:[#allocation7 + $0x198] sm:$0xff]
    %v830 = vld [vmem:[#allocation7 + $0x1a0] sm:$0xff]
    %v831 = vld [vmem:[#allocation7 + $0x1a8] sm:$0xff]
    %v832 = vld [vmem:[#allocation7 + $0x1b0] sm:$0xff]
    %v833 = vld [vmem:[#allocation7 + $0x1b8] sm:$0xff]
    %v834 = vld [vmem:[#allocation7 + $0x1c0] sm:$0xff]
    %v835 = vld [vmem:[#allocation7 + $0x1c8] sm:$0xff]
    %v836 = vld [vmem:[#allocation7 + $0x1d0] sm:$0xff]
    %v837 = vld [vmem:[#allocation7 + $0x1d8] sm:$0xff]
    %v838 = vld [vmem:[#allocation7 + $0x1e0] sm:$0xff]
    %v839 = vld [vmem:[#allocation7 + $0x1e8] sm:$0xff]
    %v840 = vld [vmem:[#allocation7 + $0x1f0] sm:$0xff]
    %v841 = vld [vmem:[#allocation7 + $0x1f8] sm:$0xff]
    %v842 = vld [vmem:[%s4] sm:$0xff]
    %v844 = vlaneseq
    %v845 = vshrl.u32 %v844, 7
    %v846 = vsub.s32 0, %v845
    %v847 = vrot.slane %v842, %v846
    %v848 = vlaneseq
    %v849 = vshrl.u32 %v848, 7
    %v850 = vsub.s32 1, %v849
    %v851 = vrot.slane %v842, %v850
    %v852 = vlaneseq
    %v853 = vshrl.u32 %v852, 7
    %v854 = vsub.s32 2, %v853
    %v855 = vrot.slane %v842, %v854
    %v856 = vlaneseq
    %v857 = vshrl.u32 %v856, 7
    %v858 = vsub.s32 3, %v857
    %v859 = vrot.slane %v842, %v858
    %v860 = vlaneseq
    %v861 = vshrl.u32 %v860, 7
    %v862 = vsub.s32 4, %v861
    %v863 = vrot.slane %v842, %v862
    %v864 = vlaneseq
    %v865 = vshrl.u32 %v864, 7
    %v866 = vsub.s32 5, %v865
    %v867 = vrot.slane %v842, %v866
    %v868 = vlaneseq
    %v869 = vshrl.u32 %v868, 7
    %v870 = vsub.s32 6, %v869
    %v871 = vrot.slane %v842, %v870
    %v872 = vlaneseq
    %v873 = vshrl.u32 %v872, 7
    %v874 = vsub.s32 7, %v873
    %v875 = vrot.slane %v842, %v874
    %v948 = vunpack.c.l.b16 %v778
    %v949 = vunpack.c.h.b16 %v778
    %v950 = vunpack.c.l.b16 %v779
    %v951 = vunpack.c.h.b16 %v779
    %v952 = vunpack.c.l.b16 %v780
    %v953 = vunpack.c.h.b16 %v780
    %v954 = vunpack.c.l.b16 %v781
    %v955 = vunpack.c.h.b16 %v781
    %v956 = vunpack.c.l.b16 %v782
    %v957 = vunpack.c.h.b16 %v782
    %v958 = vunpack.c.l.b16 %v783
    %v959 = vunpack.c.h.b16 %v783
    %v960 = vunpack.c.l.b16 %v784
    %v961 = vunpack.c.h.b16 %v784
    %v962 = vunpack.c.l.b16 %v785
    %v963 = vunpack.c.h.b16 %v785
    %v964 = vunpack.c.l.b16 %v786
    %v965 = vunpack.c.h.b16 %v786
    %v966 = vunpack.c.l.b16 %v787
    %v967 = vunpack.c.h.b16 %v787
    %v968 = vunpack.c.l.b16 %v788
    %v969 = vunpack.c.h.b16 %v788
    %v970 = vunpack.c.l.b16 %v789
    %v971 = vunpack.c.h.b16 %v789
    %v972 = vunpack.c.l.b16 %v790
    %v973 = vunpack.c.h.b16 %v790
    %v974 = vunpack.c.l.b16 %v791
    %v975 = vunpack.c.h.b16 %v791
    %v976 = vunpack.c.l.b16 %v792
    %v977 = vunpack.c.h.b16 %v792
    %v978 = vunpack.c.l.b16 %v793
    %v979 = vunpack.c.h.b16 %v793
    %v980 = vunpack.c.l.b16 %v794
    %v981 = vunpack.c.h.b16 %v794
    %v982 = vunpack.c.l.b16 %v795
    %v983 = vunpack.c.h.b16 %v795
    %v984 = vunpack.c.l.b16 %v796
    %v985 = vunpack.c.h.b16 %v796
    %v986 = vunpack.c.l.b16 %v797
    %v987 = vunpack.c.h.b16 %v797
    %v988 = vunpack.c.l.b16 %v798
    %v989 = vunpack.c.h.b16 %v798
    %v990 = vunpack.c.l.b16 %v799
    %v991 = vunpack.c.h.b16 %v799
    %v992 = vunpack.c.l.b16 %v800
    %v993 = vunpack.c.h.b16 %v800
    %v994 = vunpack.c.l.b16 %v801
    %v995 = vunpack.c.h.b16 %v801
    %v996 = vunpack.c.l.b16 %v802
    %v997 = vunpack.c.h.b16 %v802
    %v998 = vunpack.c.l.b16 %v803
    %v999 = vunpack.c.h.b16 %v803
    %v1000 = vunpack.c.l.b16 %v804
    %v1001 = vunpack.c.h.b16 %v804
    %v1002 = vunpack.c.l.b16 %v805
    %v1003 = vunpack.c.h.b16 %v805
    %v1004 = vunpack.c.l.b16 %v806
    %v1005 = vunpack.c.h.b16 %v806
    %v1006 = vunpack.c.l.b16 %v807
    %v1007 = vunpack.c.h.b16 %v807
    %v1008 = vunpack.c.l.b16 %v808
    %v1009 = vunpack.c.h.b16 %v808
    %v1010 = vunpack.c.l.b16 %v809
    %v1011 = vunpack.c.h.b16 %v809
    %v1012 = vunpack.c.l.b16 %v810
    %v1013 = vunpack.c.h.b16 %v810
    %v1014 = vunpack.c.l.b16 %v811
    %v1015 = vunpack.c.h.b16 %v811
    %v1016 = vunpack.c.l.b16 %v812
    %v1017 = vunpack.c.h.b16 %v812
    %v1018 = vunpack.c.l.b16 %v813
    %v1019 = vunpack.c.h.b16 %v813
    %v1020 = vunpack.c.l.b16 %v814
    %v1021 = vunpack.c.h.b16 %v814
    %v1022 = vunpack.c.l.b16 %v815
    %v1023 = vunpack.c.h.b16 %v815
    %v1024 = vunpack.c.l.b16 %v816
    %v1025 = vunpack.c.h.b16 %v816
    %v1026 = vunpack.c.l.b16 %v817
    %v1027 = vunpack.c.h.b16 %v817
    %v1028 = vunpack.c.l.b16 %v818
    %v1029 = vunpack.c.h.b16 %v818
    %v1030 = vunpack.c.l.b16 %v819
    %v1031 = vunpack.c.h.b16 %v819
    %v1032 = vunpack.c.l.b16 %v820
    %v1033 = vunpack.c.h.b16 %v820
    %v1034 = vunpack.c.l.b16 %v821
    %v1035 = vunpack.c.h.b16 %v821
    %v1036 = vunpack.c.l.b16 %v822
    %v1037 = vunpack.c.h.b16 %v822
    %v1038 = vunpack.c.l.b16 %v823
    %v1039 = vunpack.c.h.b16 %v823
    %v1040 = vunpack.c.l.b16 %v824
    %v1041 = vunpack.c.h.b16 %v824
    %v1042 = vunpack.c.l.b16 %v825
    %v1043 = vunpack.c.h.b16 %v825
    %v1044 = vunpack.c.l.b16 %v826
    %v1045 = vunpack.c.h.b16 %v826
    %v1046 = vunpack.c.l.b16 %v827
    %v1047 = vunpack.c.h.b16 %v827
    %v1048 = vunpack.c.l.b16 %v828
    %v1049 = vunpack.c.h.b16 %v828
    %v1050 = vunpack.c.l.b16 %v829
    %v1051 = vunpack.c.h.b16 %v829
    %v1052 = vunpack.c.l.b16 %v830
    %v1053 = vunpack.c.h.b16 %v830
    %v1054 = vunpack.c.l.b16 %v831
    %v1055 = vunpack.c.h.b16 %v831
    %v1056 = vunpack.c.l.b16 %v832
    %v1057 = vunpack.c.h.b16 %v832
    %v1058 = vunpack.c.l.b16 %v833
    %v1059 = vunpack.c.h.b16 %v833
    %v1060 = vunpack.c.l.b16 %v834
    %v1061 = vunpack.c.h.b16 %v834
    %v1062 = vunpack.c.l.b16 %v835
    %v1063 = vunpack.c.h.b16 %v835
    %v1064 = vunpack.c.l.b16 %v836
    %v1065 = vunpack.c.h.b16 %v836
    %v1066 = vunpack.c.l.b16 %v837
    %v1067 = vunpack.c.h.b16 %v837
    %v1068 = vunpack.c.l.b16 %v838
    %v1069 = vunpack.c.h.b16 %v838
    %v1070 = vunpack.c.l.b16 %v839
    %v1071 = vunpack.c.h.b16 %v839
    %v1072 = vunpack.c.l.b16 %v840
    %v1073 = vunpack.c.h.b16 %v840
    %v1074 = vunpack.c.l.b16 %v841
    %v1075 = vunpack.c.h.b16 %v841
    %v1076 = vpack.c.b16 %v956, %v948
    %v1077 = vpack.c.b16 %v957, %v949
    %v1078 = vpack.c.b16 %v958, %v950
    %v1079 = vpack.c.b16 %v959, %v951
    %v1080 = vpack.c.b16 %v960, %v952
    %v1081 = vpack.c.b16 %v961, %v953
    %v1082 = vpack.c.b16 %v962, %v954
    %v1083 = vpack.c.b16 %v963, %v955
    %v1084 = vpack.c.b16 %v972, %v964
    %v1085 = vpack.c.b16 %v973, %v965
    %v1086 = vpack.c.b16 %v974, %v966
    %v1087 = vpack.c.b16 %v975, %v967
    %v1088 = vpack.c.b16 %v976, %v968
    %v1089 = vpack.c.b16 %v977, %v969
    %v1090 = vpack.c.b16 %v978, %v970
    %v1091 = vpack.c.b16 %v979, %v971
    %v1092 = vpack.c.b16 %v988, %v980
    %v1093 = vpack.c.b16 %v989, %v981
    %v1094 = vpack.c.b16 %v990, %v982
    %v1095 = vpack.c.b16 %v991, %v983
    %v1096 = vpack.c.b16 %v992, %v984
    %v1097 = vpack.c.b16 %v993, %v985
    %v1098 = vpack.c.b16 %v994, %v986
    %v1099 = vpack.c.b16 %v995, %v987
    %v1100 = vpack.c.b16 %v1004, %v996
    %v1101 = vpack.c.b16 %v1005, %v997
    %v1102 = vpack.c.b16 %v1006, %v998
    %v1103 = vpack.c.b16 %v1007, %v999
    %v1104 = vpack.c.b16 %v1008, %v1000
    %v1105 = vpack.c.b16 %v1009, %v1001
    %v1106 = vpack.c.b16 %v1010, %v1002
    %v1107 = vpack.c.b16 %v1011, %v1003
    %v1108 = vpack.c.b16 %v1020, %v1012
    %v1109 = vpack.c.b16 %v1021, %v1013
    %v1110 = vpack.c.b16 %v1022, %v1014
    %v1111 = vpack.c.b16 %v1023, %v1015
    %v1112 = vpack.c.b16 %v1024, %v1016
    %v1113 = vpack.c.b16 %v1025, %v1017
    %v1114 = vpack.c.b16 %v1026, %v1018
    %v1115 = vpack.c.b16 %v1027, %v1019
    %v1116 = vpack.c.b16 %v1036, %v1028
    %v1117 = vpack.c.b16 %v1037, %v1029
    %v1118 = vpack.c.b16 %v1038, %v1030
    %v1119 = vpack.c.b16 %v1039, %v1031
    %v1120 = vpack.c.b16 %v1040, %v1032
    %v1121 = vpack.c.b16 %v1041, %v1033
    %v1122 = vpack.c.b16 %v1042, %v1034
    %v1123 = vpack.c.b16 %v1043, %v1035
    %v1124 = vpack.c.b16 %v1052, %v1044
    %v1125 = vpack.c.b16 %v1053, %v1045
    %v1126 = vpack.c.b16 %v1054, %v1046
    %v1127 = vpack.c.b16 %v1055, %v1047
    %v1128 = vpack.c.b16 %v1056, %v1048
    %v1129 = vpack.c.b16 %v1057, %v1049
    %v1130 = vpack.c.b16 %v1058, %v1050
    %v1131 = vpack.c.b16 %v1059, %v1051
    %v1132 = vpack.c.b16 %v1068, %v1060
    %v1133 = vpack.c.b16 %v1069, %v1061
    %v1134 = vpack.c.b16 %v1070, %v1062
    %v1135 = vpack.c.b16 %v1071, %v1063
    %v1136 = vpack.c.b16 %v1072, %v1064
    %v1137 = vpack.c.b16 %v1073, %v1065
    %v1138 = vpack.c.b16 %v1074, %v1066
    %v1139 = vpack.c.b16 %v1075, %v1067
    %1204 = vmatprep.subr.bf16.mxu0 %v1077
    %1205 = vmatpush1.bf16.msra.mxu0 %v1076
    %1206 = vmatprep.subr.bf16.mxu0 %v1085
    %1207 = vmatpush1.bf16.msra.mxu0 %v1084
    %1208 = vmatprep.subr.bf16.mxu0 %v1093
    %1209 = vmatpush1.bf16.msra.mxu0 %v1092
    %1210 = vmatprep.subr.bf16.mxu0 %v1101
    %1211 = vmatpush1.bf16.msra.mxu0 %v1100
    %1212 = vmatprep.subr.bf16.mxu0 %v1109
    %1213 = vmatpush1.bf16.msra.mxu0 %v1108
    %1214 = vmatprep.subr.bf16.mxu0 %v1117
    %1215 = vmatpush1.bf16.msra.mxu0 %v1116
    %1216 = vmatprep.subr.bf16.mxu0 %v1125
    %1217 = vmatpush1.bf16.msra.mxu0 %v1124
    %1218 = vmatprep.subr.bf16.mxu0 %v1133
    %1219 = vmatpush1.bf16.msra.mxu0 %v1132
    %1220 = vmatprep.subr.bf16.mxu0 0
    %1221 = vmatpush1.bf16.msra.mxu0 0
    %1222 = vmatprep.subr.bf16.mxu0 0
    %1223 = vmatpush1.bf16.msra.mxu0 0
    %1224 = vmatprep.subr.bf16.mxu0 0
    %1225 = vmatpush1.bf16.msra.mxu0 0
    %1226 = vmatprep.subr.bf16.mxu0 0
    %1227 = vmatpush1.bf16.msra.mxu0 0
    %1228 = vmatprep.subr.bf16.mxu0 0
    %1229 = vmatpush1.bf16.msra.mxu0 0
    %1230 = vmatprep.subr.bf16.mxu0 0
    %1231 = vmatpush1.bf16.msra.mxu0 0
    %1232 = vmatprep.subr.bf16.mxu0 0
    %1233 = vmatpush1.bf16.msra.mxu0 0
    %1234 = vmatprep.subr.bf16.mxu0 0
    %1235 = vmatpush1.bf16.msra.mxu0 0
    %1236 = vmatprep.mubr.bf16.mxu0 0
    %1237 = vmatmul.mubr.bf16.gmra.mrb[0].mxu0 %v777
    %v1238 = vpop.f32.mrb[0].mxu0
    %v1239 = vadd.f32 %v847, %v1238
    %v1240 = vpop.f32.mrb[0].mxu0
    %v1241 = vadd.f32 %v851, %v1240
    %v1242 = vpop.f32.mrb[0].mxu0
    %v1243 = vadd.f32 %v847, %v1242
    %v1244 = vpop.f32.mrb[0].mxu0
    %v1245 = vadd.f32 %v851, %v1244
    %1246 = vdwg.mxu0
    %1247 = vmatprep.subr.bf16.mxu0 %v1079
    %1248 = vmatpush1.bf16.msra.mxu0 %v1078
    %1249 = vmatprep.subr.bf16.mxu0 %v1087
    %1250 = vmatpush1.bf16.msra.mxu0 %v1086
    %1251 = vmatprep.subr.bf16.mxu0 %v1095
    %1252 = vmatpush1.bf16.msra.mxu0 %v1094
    %1253 = vmatprep.subr.bf16.mxu0 %v1103
    %1254 = vmatpush1.bf16.msra.mxu0 %v1102
    %1255 = vmatprep.subr.bf16.mxu0 %v1111
    %1256 = vmatpush1.bf16.msra.mxu0 %v1110
    %1257 = vmatprep.subr.bf16.mxu0 %v1119
    %1258 = vmatpush1.bf16.msra.mxu0 %v1118
    %1259 = vmatprep.subr.bf16.mxu0 %v1127
    %1260 = vmatpush1.bf16.msra.mxu0 %v1126
    %1261 = vmatprep.subr.bf16.mxu0 %v1135
    %1262 = vmatpush1.bf16.msra.mxu0 %v1134
    %1263 = vmatprep.subr.bf16.mxu0 0
    %1264 = vmatpush1.bf16.msra.mxu0 0
    %1265 = vmatprep.subr.bf16.mxu0 0
    %1266 = vmatpush1.bf16.msra.mxu0 0
    %1267 = vmatprep.subr.bf16.mxu0 0
    %1268 = vmatpush1.bf16.msra.mxu0 0
    %1269 = vmatprep.subr.bf16.mxu0 0
    %1270 = vmatpush1.bf16.msra.mxu0 0
    %1271 = vmatprep.subr.bf16.mxu0 0
    %1272 = vmatpush1.bf16.msra.mxu0 0
    %1273 = vmatprep.subr.bf16.mxu0 0
    %1274 = vmatpush1.bf16.msra.mxu0 0
    %1275 = vmatprep.subr.bf16.mxu0 0
    %1276 = vmatpush1.bf16.msra.mxu0 0
    %1277 = vmatprep.subr.bf16.mxu0 0
    %1278 = vmatpush1.bf16.msra.mxu0 0
    %1279 = vmatprep.mubr.bf16.mxu0 0
    %1280 = vmatmul.mubr.bf16.gmra.mrb[0].mxu0 %v777
    %v1281 = vpop.f32.mrb[0].mxu0
    %v1282 = vadd.f32 %v855, %v1281
    %v1283 = vpop.f32.mrb[0].mxu0
    %v1284 = vadd.f32 %v859, %v1283
    %v1285 = vpop.f32.mrb[0].mxu0
    %v1286 = vadd.f32 %v855, %v1285
    %v1287 = vpop.f32.mrb[0].mxu0
    %v1288 = vadd.f32 %v859, %v1287
    %1289 = vdwg.mxu0
    %1290 = vmatprep.subr.bf16.mxu0 %v1081
    %1291 = vmatpush1.bf16.msra.mxu0 %v1080
    %1292 = vmatprep.subr.bf16.mxu0 %v1089
    %1293 = vmatpush1.bf16.msra.mxu0 %v1088
    %1294 = vmatprep.subr.bf16.mxu0 %v1097
    %1295 = vmatpush1.bf16.msra.mxu0 %v1096
    %1296 = vmatprep.subr.bf16.mxu0 %v1105
    %1297 = vmatpush1.bf16.msra.mxu0 %v1104
    %1298 = vmatprep.subr.bf16.mxu0 %v1113
    %1299 = vmatpush1.bf16.msra.mxu0 %v1112
    %1300 = vmatprep.subr.bf16.mxu0 %v1121
    %1301 = vmatpush1.bf16.msra.mxu0 %v1120
    %1302 = vmatprep.subr.bf16.mxu0 %v1129
    %1303 = vmatpush1.bf16.msra.mxu0 %v1128
    %1304 = vmatprep.subr.bf16.mxu0 %v1137
    %1305 = vmatpush1.bf16.msra.mxu0 %v1136
    %1306 = vmatprep.subr.bf16.mxu0 0
    %1307 = vmatpush1.bf16.msra.mxu0 0
    %1308 = vmatprep.subr.bf16.mxu0 0
    %1309 = vmatpush1.bf16.msra.mxu0 0
    %1310 = vmatprep.subr.bf16.mxu0 0
    %1311 = vmatpush1.bf16.msra.mxu0 0
    %1312 = vmatprep.subr.bf16.mxu0 0
    %1313 = vmatpush1.bf16.msra.mxu0 0
    %1314 = vmatprep.subr.bf16.mxu0 0
    %1315 = vmatpush1.bf16.msra.mxu0 0
    %1316 = vmatprep.subr.bf16.mxu0 0
    %1317 = vmatpush1.bf16.msra.mxu0 0
    %1318 = vmatprep.subr.bf16.mxu0 0
    %1319 = vmatpush1.bf16.msra.mxu0 0
    %1320 = vmatprep.subr.bf16.mxu0 0
    %1321 = vmatpush1.bf16.msra.mxu0 0
    %1322 = vmatprep.mubr.bf16.mxu0 0
    %1323 = vmatmul.mubr.bf16.gmra.mrb[0].mxu0 %v777
    %v1324 = vpop.f32.mrb[0].mxu0
    %v1325 = vadd.f32 %v863, %v1324
    %v1326 = vpop.f32.mrb[0].mxu0
    %v1327 = vadd.f32 %v867, %v1326
    %v1328 = vpop.f32.mrb[0].mxu0
    %v1329 = vadd.f32 %v863, %v1328
    %v1330 = vpop.f32.mrb[0].mxu0
    %v1331 = vadd.f32 %v867, %v1330
    %1332 = vdwg.mxu0
    %1333 = vmatprep.subr.bf16.mxu0 %v1083
    %1334 = vmatpush1.bf16.msra.mxu0 %v1082
    %1335 = vmatprep.subr.bf16.mxu0 %v1091
    %1336 = vmatpush1.bf16.msra.mxu0 %v1090
    %1337 = vmatprep.subr.bf16.mxu0 %v1099
    %1338 = vmatpush1.bf16.msra.mxu0 %v1098
    %1339 = vmatprep.subr.bf16.mxu0 %v1107
    %1340 = vmatpush1.bf16.msra.mxu0 %v1106
    %1341 = vmatprep.subr.bf16.mxu0 %v1115
    %1342 = vmatpush1.bf16.msra.mxu0 %v1114
    %1343 = vmatprep.subr.bf16.mxu0 %v1123
    %1344 = vmatpush1.bf16.msra.mxu0 %v1122
    %1345 = vmatprep.subr.bf16.mxu0 %v1131
    %1346 = vmatpush1.bf16.msra.mxu0 %v1130
    %1347 = vmatprep.subr.bf16.mxu0 %v1139
    %1348 = vmatpush1.bf16.msra.mxu0 %v1138
    %1349 = vmatprep.subr.bf16.mxu0 0
    %1350 = vmatpush1.bf16.msra.mxu0 0
    %1351 = vmatprep.subr.bf16.mxu0 0
    %1352 = vmatpush1.bf16.msra.mxu0 0
    %1353 = vmatprep.subr.bf16.mxu0 0
    %1354 = vmatpush1.bf16.msra.mxu0 0
    %1355 = vmatprep.subr.bf16.mxu0 0
    %1356 = vmatpush1.bf16.msra.mxu0 0
    %1357 = vmatprep.subr.bf16.mxu0 0
    %1358 = vmatpush1.bf16.msra.mxu0 0
    %1359 = vmatprep.subr.bf16.mxu0 0
    %1360 = vmatpush1.bf16.msra.mxu0 0
    %1361 = vmatprep.subr.bf16.mxu0 0
    %1362 = vmatpush1.bf16.msra.mxu0 0
    %1363 = vmatprep.subr.bf16.mxu0 0
    %1364 = vmatpush1.bf16.msra.mxu0 0
    %1365 = vmatprep.mubr.bf16.mxu0 0
    %1366 = vmatmul.mubr.bf16.gmra.mrb[0].mxu0 %v777
    %v1367 = vpop.f32.mrb[0].mxu0
    %v1368 = vadd.f32 %v871, %v1367
    %v1369 = vpop.f32.mrb[0].mxu0
    %v1370 = vadd.f32 %v875, %v1369
    %v1371 = vpop.f32.mrb[0].mxu0
    %v1372 = vadd.f32 %v871, %v1371
    %v1373 = vpop.f32.mrb[0].mxu0
    %v1374 = vadd.f32 %v875, %v1373
    %1375 = vdwg.mxu0
    %v1376 = vmul.f32 %v1239, 0.5
    %v1377 = vmul.f32 %v1241, 0.5
    %v1378 = vmul.f32 %v1282, 0.5
    %v1379 = vmul.f32 %v1284, 0.5
    %v1380 = vmul.f32 %v1325, 0.5
    %v1381 = vmul.f32 %v1327, 0.5
    %v1382 = vmul.f32 %v1368, 0.5
    %v1383 = vmul.f32 %v1370, 0.5
    %v1384 = vmul.f32 %v1243, 0.5
    %v1385 = vmul.f32 %v1245, 0.5
    %v1386 = vmul.f32 %v1286, 0.5
    %v1387 = vmul.f32 %v1288, 0.5
    %v1388 = vmul.f32 %v1329, 0.5
    %v1389 = vmul.f32 %v1331, 0.5
    %v1390 = vmul.f32 %v1372, 0.5
    %v1391 = vmul.f32 %v1374, 0.5
    %v1392 = vtanh.pop %v1376
    %v1393 = vtanh.pop %v1377
    %v1394 = vtanh.pop %v1378
    %v1395 = vtanh.pop %v1379
    %v1396 = vtanh.pop %v1380
    %v1397 = vtanh.pop %v1381
    %v1398 = vtanh.pop %v1382
    %v1399 = vtanh.pop %v1383
    %v1400 = vtanh.pop %v1384
    %v1401 = vtanh.pop %v1385
    %v1402 = vtanh.pop %v1386
    %v1403 = vtanh.pop %v1387
    %v1404 = vtanh.pop %v1388
    %v1405 = vtanh.pop %v1389
    %v1406 = vtanh.pop %v1390
    %v1407 = vtanh.pop %v1391
    %v1408 = vmul.f32 %v1392, 0.5
    %v1409 = vmul.f32 %v1393, 0.5
    %v1410 = vmul.f32 %v1394, 0.5
    %v1411 = vmul.f32 %v1395, 0.5
    %v1412 = vmul.f32 %v1396, 0.5
    %v1413 = vmul.f32 %v1397, 0.5
    %v1414 = vmul.f32 %v1398, 0.5
    %v1415 = vmul.f32 %v1399, 0.5
    %v1416 = vmul.f32 %v1400, 0.5
    %v1417 = vmul.f32 %v1401, 0.5
    %v1418 = vmul.f32 %v1402, 0.5
    %v1419 = vmul.f32 %v1403, 0.5
    %v1420 = vmul.f32 %v1404, 0.5
    %v1421 = vmul.f32 %v1405, 0.5
    %v1422 = vmul.f32 %v1406, 0.5
    %v1423 = vmul.f32 %v1407, 0.5
    %v1424 = vadd.f32 %v1408, 0.5
    %v1425 = vadd.f32 %v1409, 0.5
    %v1426 = vadd.f32 %v1410, 0.5
    %v1427 = vadd.f32 %v1411, 0.5
    %v1428 = vadd.f32 %v1412, 0.5
    %v1429 = vadd.f32 %v1413, 0.5
    %v1430 = vadd.f32 %v1414, 0.5
    %v1431 = vadd.f32 %v1415, 0.5
    %v1432 = vadd.f32 %v1416, 0.5
    %v1433 = vadd.f32 %v1417, 0.5
    %v1434 = vadd.f32 %v1418, 0.5
    %v1435 = vadd.f32 %v1419, 0.5
    %v1436 = vadd.f32 %v1420, 0.5
    %v1437 = vadd.f32 %v1421, 0.5
    %v1438 = vadd.f32 %v1422, 0.5
    %v1439 = vadd.f32 %v1423, 0.5
    %1440 = vst [vmem:[#allocation8] sm:$0xff] %v1424
    %1441 = vst [vmem:[#allocation8 + $0x8] sm:$0xff] %v1425
    %1442 = vst [vmem:[#allocation8 + $0x10] sm:$0xff] %v1426
    %1443 = vst [vmem:[#allocation8 + $0x18] sm:$0xff] %v1427
    %1444 = vst [vmem:[#allocation8 + $0x20] sm:$0xff] %v1428
    %1445 = vst [vmem:[#allocation8 + $0x28] sm:$0xff] %v1429
    %1446 = vst [vmem:[#allocation8 + $0x30] sm:$0xff] %v1430
    %1447 = vst [vmem:[#allocation8 + $0x38] sm:$0xff] %v1431
    %1448 = vst [vmem:[#allocation8 + $0x40] sm:$0xff] %v1432
    %1449 = vst [vmem:[#allocation8 + $0x48] sm:$0xff] %v1433
    %1450 = vst [vmem:[#allocation8 + $0x50] sm:$0xff] %v1434
    %1451 = vst [vmem:[#allocation8 + $0x58] sm:$0xff] %v1435
    %1452 = vst [vmem:[#allocation8 + $0x60] sm:$0xff] %v1436
    %1453 = vst [vmem:[#allocation8 + $0x68] sm:$0xff] %v1437
    %1454 = vst [vmem:[#allocation8 + $0x70] sm:$0xff] %v1438
    %1455 = vst [vmem:[#allocation8 + $0x78] sm:$0xff] %v1439
    // Predicated region
    $region34: #{tpu_custom_call.1} parent=1 // pred_check
      _
    $region35: #{tpu_custom_call.1} parent=1 // pred_check_branch
      %1457 = sbr.rel (0) target = $region37
    $region36: #{tpu_custom_call.1} parent=1 // pred_region
      %s1459 = ssub.s32 2048, 2048
      %1460 = vsyncadd [#allocation4], %s1459
      %s1461 = sshll.u32 [#allocation8], 4
      %s1462 = int_to_ptr.vmem [resolvable:$true] %s1461
      %1467 = dma.vmem_to_hbm [thread:$0]  %s1462, 2048, %s5, [#allocation4], 1024, 1024, 64
    $region37: #{tpu_custom_call.1} parent=1 // pred_fallthru
      _
    // Predicated region
    $region38: #{tpu_custom_call.1} parent=1 // pred_check
      _
    $region39: #{tpu_custom_call.1} parent=1 // pred_check_branch
      %1469 = sbr.rel (0) target = $region41
    $region40: #{tpu_custom_call.1} parent=1 // pred_region
      %s1471 = ssub.s32 256, 256
      %1472 = vsyncadd [#allocation10], %s1471
      %s1473 = sshll.u32 [#allocation9], 4
      %s1474 = int_to_ptr.vmem [resolvable:$true] %s1473
      %1479 = dma.vmem_to_hbm [thread:$0]  %s1474, 256, %s6, [#allocation10], 128, 128, 8
    $region41: #{tpu_custom_call.1} parent=1 // pred_fallthru
      _
    // Predicated region
    $region42: #{tpu_custom_call.1} parent=1 // pred_check
      _
    $region43: #{tpu_custom_call.1} parent=1 // pred_check_branch
      %1481 = sbr.rel (0) target = $region45
    $region44: #{tpu_custom_call.1} parent=1 // pred_region
      %1482 = dma.done [#allocation4], 2048
    $region45: #{tpu_custom_call.1} parent=1 // pred_fallthru
      _
    // Predicated region
    $region46: #{tpu_custom_call.1} parent=1 // pred_check
      _
    $region47: #{tpu_custom_call.1} parent=1 // pred_check_branch
      %1484 = sbr.rel (0) target = $region49
    $region48: #{tpu_custom_call.1} parent=1 // pred_region
      %1485 = dma.done [#allocation10], 256
    $region49: #{tpu_custom_call.1} parent=1 // pred_fallthru
      _
    %1486 = vsyncpa [#allocation3], 1
    %1487 = vsyncpa [#allocation6], 1
    %1488 = vsyncpa [#allocation4], 1
    %1489 = vsyncpa [#allocation10], 1

</llo_original>
